<compile_context>
chip_gen: v7x
topology: tpu7x:2x2x1
jax: 0.10.0
libtpu: 0.0.40
codegen_flags: <defaults>
</compile_context>

<pallas_src>
import jax
import jax.numpy as jnp
from jax.experimental import pallas as pl
from jax.experimental.pallas import tpu as pltpu


def _swarm_kernel_reduced(x_ref, w_ref, b_ref, o_ref, acc_ref):
    # x_ref: (tm, tk)  w_ref: (tk, tn)  b_ref: (1, tn)  o_ref: (tm, tn)
    # acc_ref: (tm, tn) f32 scratch, resident across the reduction axis.
    kr = pl.program_id(2)

    @pl.when(kr == 0)
    def _():
        acc_ref[...] = jnp.zeros_like(acc_ref)

    acc_ref[...] += jnp.dot(
        x_ref[...], w_ref[...], preferred_element_type=jnp.float32
    )

    @pl.when(kr == pl.num_programs(2) - 1)
    def _():
        o_ref[...] = (acc_ref[...] + b_ref[...]).astype(o_ref.dtype)


def _swarm_kernel_single(x_ref, w_ref, b_ref, o_ref):
    # Whole contraction in one tile: no accumulator scratch needed.
    o_ref[...] = (
        jnp.dot(x_ref[...], w_ref[...], preferred_element_type=jnp.float32)
        + b_ref[...]
    ).astype(o_ref.dtype)


def _pick_tile(dim, candidates):
    """Largest candidate tile that divides `dim`, else the full extent."""
    for c in candidates:
        if dim % c == 0:
            return c
    return dim  # full extent is always a legal block dim


def parallel_swarm_forward(x, weights, biases):
    """Run the swarm: for each model k, compute x @ W_k + b_k.

    Args:
      x:       (B, D_in)        float32
      weights: (K, D_in, D_out) float32  -- stacked per-model weights
      biases:  (K, D_out)       float32  -- stacked per-model biases

    Returns:
      list of K arrays, each (B, D_out), matching ParallelSwarm's list output.
    """
    K, D_in, D_out = weights.shape
    B = x.shape[0]
    out_dtype = x.dtype

    # ---- Fuse the K sub-models into one lane-dense matmul -------------------
    N = K * D_out
    N_pad = ((N + 127) // 128) * 128  # output last dim -> multiple of 128

    w_all = jnp.transpose(weights, (1, 0, 2)).reshape(D_in, N)
    b_all = biases.reshape(1, N)
    if N_pad != N:
        w_all = jnp.pad(w_all, ((0, 0), (0, N_pad - N)))
        b_all = jnp.pad(b_all, ((0, 0), (0, N_pad - N)))

    # bf16 streaming operands (halves HBM bytes, MXU-native); f32 accumulate.
    x_bf = x.astype(jnp.bfloat16)
    w_bf = w_all.astype(jnp.bfloat16)
    b_f32 = b_all.astype(jnp.float32)

    # ---- Generation-safe tile sizes (fit default/explicit VMEM budgets) -----
    tm = _pick_tile(B, (256, 128, 64, 32, 16, 8))   # batch tile
    tn = _pick_tile(N_pad, (512, 256, 128))          # fused K*D_out tile
    tk = _pick_tile(D_in, (512, 256, 128))           # contraction tile

    grid_k = D_in // tk
    grid = (B // tm, N_pad // tn, grid_k)

    itemsize_out = jnp.dtype(out_dtype).itemsize
    cost = pl.CostEstimate(
        flops=2 * B * D_in * N_pad,
        transcendentals=0,
        bytes_accessed=(x_bf.size * 2 + w_bf.size * 2 + b_f32.size * 4
                        + B * N_pad * itemsize_out),
    )

    in_specs = [
        # x tile: same rows for every (j, k) pair along N
        pl.BlockSpec((tm, tk), lambda i, j, k: (i, k)),
        # fused weight tile: streams over (k, j)
        pl.BlockSpec((tk, tn), lambda i, j, k: (k, j)),
        # fused bias tile: varies only with j
        pl.BlockSpec((1, tn), lambda i, j, k: (0, j)),
    ]
    out_specs = pl.BlockSpec((tm, tn), lambda i, j, k: (i, j))

    if grid_k == 1:
        kernel = _swarm_kernel_single
        scratch_shapes = []
    else:
        kernel = _swarm_kernel_reduced
        scratch_shapes = [pltpu.VMEM((tm, tn), jnp.float32)]

    out = pl.pallas_call(
        kernel,
        out_shape=jax.ShapeDtypeStruct((B, N_pad), out_dtype),
        grid_spec=pltpu.PrefetchScalarGridSpec(
            num_scalar_prefetch=0,
            grid=grid,
            in_specs=in_specs,
            out_specs=out_specs,
            scratch_shapes=scratch_shapes,
        ),
        compiler_params=pltpu.CompilerParams(
            dimension_semantics=("parallel", "parallel", "arbitrary"),
            vmem_limit_bytes=32 * 1024 * 1024,
        ),
        cost_estimate=cost,
    )(x_bf, w_bf, b_f32)

    # Drop the lane padding and split back into the per-model list
    # (ParallelSwarm.forward returns List[Tensor]).
    return jnp.split(out[:, :N], K, axis=1)


if __name__ == "__main__":
    # Small, deterministic setup: a swarm of 3 linear models.
    B, D_in, D_out, K = 8, 32, 32, 3

    key = jax.random.PRNGKey(0)
    kx, kw, kb = jax.random.split(key, 3)

    x = jax.random.normal(kx, (B, D_in), dtype=jnp.float32)
    weights = jax.random.normal(kw, (K, D_in, D_out), dtype=jnp.float32) * 0.1
    biases = jax.random.normal(kb, (K, D_out), dtype=jnp.float32) * 0.1

    outputs = parallel_swarm_forward(x, weights, biases)
    outputs = [jax.block_until_ready(o) for o in outputs]

    # Reference check against plain JAX (same semantics as the PyTorch loop).
    # Tolerance is loosened to cover the bf16 cast of x / weights.
    refs = [x @ weights[k] + biases[k] for k in range(K)]
    for o, r in zip(outputs, refs):
        assert o.shape == (B, D_out)
        assert jnp.allclose(o, r, atol=3e-2, rtol=3e-2)

    print("KERNEL_OK")
</pallas_src>

<mosaic_0001>
module attributes {stable_mosaic.version = 11 : i64} {
  func.func @_swarm_kernel_single(%arg0: i32, %arg1: i32, %arg2: i32, %arg3: memref<8x32xbf16, #tpu.memory_space<vmem>>, %arg4: memref<32x128xbf16, #tpu.memory_space<vmem>>, %arg5: memref<1x128xf32, #tpu.memory_space<vmem>>, %arg6: memref<8x128xf32, #tpu.memory_space<vmem>>) attributes {dimension_semantics = [#tpu.dimension_semantics<parallel>, #tpu.dimension_semantics<parallel>, #tpu.dimension_semantics<arbitrary>], iteration_bounds = array<i64: 1, 1, 1>, scalar_prefetch = 0 : i64, scratch_operands = 0 : i64, tpu.core_type = #tpu.core_type<tc>, window_params = [{transform_indices = @transform_0, window_bounds = array<i64: 8, 32>}, {transform_indices = @transform_1, window_bounds = array<i64: 32, 128>}, {transform_indices = @transform_2, window_bounds = array<i64: 1, 128>}, {transform_indices = @transform_3, window_bounds = array<i64: 8, 128>}]} {
    %c0 = arith.constant 0 : index
    %c0_0 = arith.constant 0 : index
    %0 = vector.load %arg3[%c0, %c0_0] : memref<8x32xbf16, #tpu.memory_space<vmem>>, vector<8x32xbf16>
    %c0_1 = arith.constant 0 : index
    %c0_2 = arith.constant 0 : index
    %1 = vector.load %arg4[%c0_1, %c0_2] : memref<32x128xbf16, #tpu.memory_space<vmem>>, vector<32x128xbf16>
    %cst = arith.constant dense<0.000000e+00> : vector<8x128xf32>
    %2 = tpu.matmul %0, %1, %cst {dimension_numbers = #tpu.dot_dimension_numbers<[1], [0], [0], [1], [0, 0, 1, 1], [], []>} : vector<8x32xbf16>, vector<32x128xbf16>, vector<8x128xf32> -> vector<8x128xf32>
    %c0_3 = arith.constant 0 : index
    %c0_4 = arith.constant 0 : index
    %3 = vector.load %arg5[%c0_3, %c0_4] : memref<1x128xf32, #tpu.memory_space<vmem>>, vector<1x128xf32>
    %4 = vector.broadcast %3 : vector<1x128xf32> to vector<8x128xf32>
    %5 = arith.addf %2, %4 : vector<8x128xf32>
    %c0_5 = arith.constant 0 : index
    %c0_6 = arith.constant 0 : index
    %6 = vector.load %arg6[%c0_5, %c0_6] : memref<8x128xf32, #tpu.memory_space<vmem>>, vector<8x128xf32>
    tpu.vector_store %arg6[%c0_5, %c0_6], %5 {strides = array<i32>} : memref<8x128xf32, #tpu.memory_space<vmem>>, vector<8x128xf32>,
    return
  }
  func.func @transform_0(%arg0: i32, %arg1: i32, %arg2: i32) -> (i32, i32) {
    %c0_i32 = arith.constant 0 : i32
    return %arg0, %arg2 : i32, i32
  }
  func.func @transform_1(%arg0: i32, %arg1: i32, %arg2: i32) -> (i32, i32) {
    %c0_i32 = arith.constant 0 : i32
    return %arg2, %arg1 : i32, i32
  }
  func.func @transform_2(%arg0: i32, %arg1: i32, %arg2: i32) -> (i32, i32) {
    %c0_i32 = arith.constant 0 : i32
    %c0_i32_0 = arith.constant 0 : i32
    return %c0_i32, %arg1 : i32, i32
  }
  func.func @transform_3(%arg0: i32, %arg1: i32, %arg2: i32) -> (i32, i32) {
    %c0_i32 = arith.constant 0 : i32
    return %arg0, %arg1 : i32, i32
  }
}

</mosaic_0001>

<llo_original>
// kernel: tpu_custom_call.1
$region0: #{tpu_custom_call.1}
  #allocation0 [shape = 'u32[]', space=smem, size = 0x4, offset = 0x4, fixed_abs, tag = 'smem constant byte address 0x4 - core index']
  #allocation1 [shape = 'u32[144,128]{1,0:T(1,128)}', space=vmem, size = 0x12000, scoped, tag = 'internal scratch']
  %s0 = inlined_call_operand.hbm [shape: bf16[8,32], index: 0, kind: input, shape index: {}]
  %s1 = inlined_call_operand.hbm [shape: bf16[32,128], index: 1, kind: input, shape index: {}]
  %s2 = inlined_call_operand.vmem [shape: f32[1,128], index: 2, kind: input, shape index: {}]
  %s3 = inlined_call_operand.hbm [shape: f32[8,128], index: 3, kind: output, shape index: {}]
  %s4 = sld [smem:[#allocation0]]
  $region30: #{tpu_custom_call.1} parent=0
    _
  %s6 = ssub.s32 1, %s4
  %s7 = scalar_select 0, %s6, %s4
  $region1: #{tpu_custom_call.1} parent=0
    #allocation2 [shape = 'u8[2048]{0}', space=vmem, size = 0x800, scoped, tag = 'input window, operand 0, single buffered']
    #allocation3 [shape = 's32[1]{0}', space=sflag, size = 0x4, scoped, tag = 'scoped memory for tpu_custom_call.1']
    #allocation4 [shape = 's32[1]{0}', space=sflag, size = 0x4, scoped, tag = 'scoped memory for tpu_custom_call.1']
    #allocation5 [shape = 'u8[8192]{0}', space=vmem, size = 0x2000, scoped, tag = 'input window, operand 1, single buffered']
    #allocation6 [shape = 's32[1]{0}', space=sflag, size = 0x4, scoped, tag = 'scoped memory for tpu_custom_call.1']
    #allocation7 [shape = 'u8[4096]{0}', space=vmem, size = 0x1000, scoped, tag = 'output window, operand 0, single buffered']
    %8 = vsyncpa [#allocation3], 0
    %9 = vsyncpa [#allocation6], 0
    %10 = vsyncpa [#allocation4], 0
    // Predicated region
    $region2: #{tpu_custom_call.1} parent=1 // pred_check
      _
    $region3: #{tpu_custom_call.1} parent=1 // pred_check_branch
      %12 = sbr.rel (0) target = $region5
    $region4: #{tpu_custom_call.1} parent=1 // pred_region
      %s14 = ssub.s32 64, 64
      %15 = vsyncadd [#allocation3], %s14
      %s17 = sshll.u32 [#allocation2], 4
      %s18 = int_to_ptr.vmem [resolvable:$true] %s17
      %20 = dma.hbm_to_vmem [thread:$0]  %s0, 64, %s18, [#allocation3]
    $region5: #{tpu_custom_call.1} parent=1 // pred_fallthru
      _
    // Predicated region
    $region6: #{tpu_custom_call.1} parent=1 // pred_check
      _
    $region7: #{tpu_custom_call.1} parent=1 // pred_check_branch
      %22 = sbr.rel (0) target = $region9
    $region8: #{tpu_custom_call.1} parent=1 // pred_region
      %s24 = ssub.s32 256, 256
      %25 = vsyncadd [#allocation6], %s24
      %s26 = sshll.u32 [#allocation5], 4
      %s27 = int_to_ptr.vmem [resolvable:$true] %s26
      %32 = dma.hbm_to_vmem [thread:$0]  %s1, 256, %s27, [#allocation6], 64, 64, 4
    $region9: #{tpu_custom_call.1} parent=1 // pred_fallthru
      _
    // Predicated region
    $region10: #{tpu_custom_call.1} parent=1 // pred_check
      _
    $region11: #{tpu_custom_call.1} parent=1 // pred_check_branch
      %34 = sbr.rel (0) target = $region13
    $region12: #{tpu_custom_call.1} parent=1 // pred_region
      _
    $region13: #{tpu_custom_call.1} parent=1 // pred_fallthru
      _
    // Predicated region
    $region14: #{tpu_custom_call.1} parent=1 // pred_check
      _
    $region15: #{tpu_custom_call.1} parent=1 // pred_check_branch
      %36 = sbr.rel (0) target = $region17
    $region16: #{tpu_custom_call.1} parent=1 // pred_region
      %37 = dma.done [#allocation3], 64
    $region17: #{tpu_custom_call.1} parent=1 // pred_fallthru
      _
    // Predicated region
    $region18: #{tpu_custom_call.1} parent=1 // pred_check
      _
    $region19: #{tpu_custom_call.1} parent=1 // pred_check_branch
      %39 = sbr.rel (0) target = $region21
    $region20: #{tpu_custom_call.1} parent=1 // pred_region
      %40 = dma.done [#allocation6], 256
    $region21: #{tpu_custom_call.1} parent=1 // pred_fallthru
      _
    %v42 = vld [vmem:[#allocation2] sm:$0xf]
    %v43 = vld [vmem:[#allocation5] sm:$0xf]
    %v44 = vld [vmem:[#allocation5 + $0x4] sm:$0xf]
    %v45 = vld [vmem:[#allocation5 + $0x8] sm:$0xf]
    %v46 = vld [vmem:[#allocation5 + $0xc] sm:$0xf]
    %v47 = vld [vmem:[%s2] sm:$0x1]
    %v49 = vlaneseq
    %v50 = vshrl.u32 %v49, 7
    %v51 = vsub.s32 0, %v50
    %v52 = vrot.slane %v47, %v51
    %v58 = vunpack.c.l.b16 %v43
    %v59 = vunpack.c.l.b16 %v44
    %v60 = vunpack.c.l.b16 %v45
    %v61 = vunpack.c.l.b16 %v46
    %v62 = vpack.c.b16 %v59, %v58
    %v63 = vpack.c.b16 %v61, %v60
    %vm66 = vcmask 261120
    %v68 = vsel %vm66, %v42, 0
    %70 = vmatprep.subr.bf16.mxu0 0
    %71 = vmatpush1.bf16.msra.mxu0 %v62
    %72 = vmatprep.subr.bf16.mxu0 0
    %73 = vmatpush1.bf16.msra.mxu0 %v63
    %74 = vmatprep.subr.bf16.mxu0 0
    %75 = vmatpush1.bf16.msra.mxu0 0
    %76 = vmatprep.subr.bf16.mxu0 0
    %77 = vmatpush1.bf16.msra.mxu0 0
    %78 = vmatprep.subr.bf16.mxu0 0
    %79 = vmatpush1.bf16.msra.mxu0 0
    %80 = vmatprep.subr.bf16.mxu0 0
    %81 = vmatpush1.bf16.msra.mxu0 0
    %82 = vmatprep.subr.bf16.mxu0 0
    %83 = vmatpush1.bf16.msra.mxu0 0
    %84 = vmatprep.subr.bf16.mxu0 0
    %85 = vmatpush1.bf16.msra.mxu0 0
    %86 = vmatprep.subr.bf16.mxu0 0
    %87 = vmatpush1.bf16.msra.mxu0 0
    %88 = vmatprep.subr.bf16.mxu0 0
    %89 = vmatpush1.bf16.msra.mxu0 0
    %90 = vmatprep.subr.bf16.mxu0 0
    %91 = vmatpush1.bf16.msra.mxu0 0
    %92 = vmatprep.subr.bf16.mxu0 0
    %93 = vmatpush1.bf16.msra.mxu0 0
    %94 = vmatprep.subr.bf16.mxu0 0
    %95 = vmatpush1.bf16.msra.mxu0 0
    %96 = vmatprep.subr.bf16.mxu0 0
    %97 = vmatpush1.bf16.msra.mxu0 0
    %98 = vmatprep.subr.bf16.mxu0 0
    %99 = vmatpush1.bf16.msra.mxu0 0
    %100 = vmatprep.subr.bf16.mxu0 0
    %101 = vmatpush1.bf16.msra.mxu0 0
    %102 = vmatprep.mubr.bf16.mxu0 0
    %103 = vmatmul.mubr.bf16.gmra.mrb[0].mxu0 %v68
    %v104 = vpop.f32.mrb[0].mxu0
    %v105 = vadd.f32 %v52, %v104
    %v106 = vpop.f32.mrb[0].mxu0
    %v107 = vpop.f32.mrb[0].mxu0
    %v108 = vpop.f32.mrb[0].mxu0
    %109 = vdwg.mxu0
    %110 = vst [vmem:[#allocation7] sm:$0xff] %v105
    // Predicated region
    $region22: #{tpu_custom_call.1} parent=1 // pred_check
      _
    $region23: #{tpu_custom_call.1} parent=1 // pred_check_branch
      %112 = sbr.rel (0) target = $region25
    $region24: #{tpu_custom_call.1} parent=1 // pred_region
      %s114 = ssub.s32 128, 128
      %115 = vsyncadd [#allocation4], %s114
      %s117 = sshll.u32 [#allocation7], 4
      %s118 = int_to_ptr.vmem [resolvable:$true] %s117
      %120 = dma.vmem_to_hbm [thread:$0]  %s118, 128, %s3, [#allocation4]
    $region25: #{tpu_custom_call.1} parent=1 // pred_fallthru
      _
    // Predicated region
    $region26: #{tpu_custom_call.1} parent=1 // pred_check
      _
    $region27: #{tpu_custom_call.1} parent=1 // pred_check_branch
      %122 = sbr.rel (0) target = $region29
    $region28: #{tpu_custom_call.1} parent=1 // pred_region
      %123 = dma.done [#allocation4], 128
    $region29: #{tpu_custom_call.1} parent=1 // pred_fallthru
      _
    %124 = vsyncpa [#allocation3], 1
    %125 = vsyncpa [#allocation6], 1
    %126 = vsyncpa [#allocation4], 1

</llo_original>
